<compile_context>
chip_gen: v6e
topology: v6e:2x2x1
jax: 0.10.0
libtpu: 0.0.40
codegen_flags: <defaults>
</compile_context>

<pallas_src>
import jax
import jax.numpy as jnp
from jax import lax
from jax.experimental import pallas as pl
from jax.experimental.pallas import tpu as pltpu

_EPS = 1e-5


# ----------------------------- Pallas kernel ------------------------------ #
def _repblock_kernel(x_ref, w1_ref, b1_ref, w2_ref, b2_ref, o_ref, h1_ref):
    """Both RepBlock stages for ONE image; each stage = 3x3 conv + bias + act.

    x_ref  : (H+2, WC) bf16 lane-dense input slab, rows 0 / H+1 = zero halo,
                            WC = W*C (128 here).
    w*_ref : (3, WC, WC) bf16 block-banded weights (ky-indexed, kx folded in).
    b*_ref : (H, WC)  f32   exact per-position bias map (image independent).
    o_ref  : (H, WC)  f32   stage-2 output (real rows only).
    h1_ref : (H+2, WC) f32  VMEM scratch: stage-1 output with zero halo rows.
    """
    H, WC = o_ref.shape

    def conv3x3(tap, w_ref, b_ref):
        # out[r] = bias[r] + sum_ky slab[r + ky] @ w[ky],  r = 0..H-1
        acc = b_ref[...] + jnp.dot(tap(0), w_ref[0],
                                   preferred_element_type=jnp.float32)
        acc = acc + jnp.dot(tap(1), w_ref[1],
                            preferred_element_type=jnp.float32)
        acc = acc + jnp.dot(tap(2), w_ref[2],
                            preferred_element_type=jnp.float32)
        return acc

    # ---- stage 1: ReLU(rep-fused 3x3 conv), H real rows only.
    h1 = jnp.maximum(conv3x3(lambda k: x_ref[k:k + H, :], w1_ref, b1_ref), 0.0)

    # Stage-1 activation never leaves VMEM; explicit zero halo rows give
    # stage 2 exact zero padding (no mask multiply, no junk rows).
    zrow = jnp.zeros((1, WC), jnp.float32)
    h1_ref[0:1, :] = zrow
    h1_ref[1:H + 1, :] = h1
    h1_ref[H + 1:H + 2, :] = zrow

    # ---- stage 2: sigmoid(rep-fused 3x3 conv); bf16 MXU operands, f32 acc.
    pre2 = conv3x3(lambda k: h1_ref[k:k + H, :].astype(jnp.bfloat16),
                   w2_ref, b2_ref)
    o_ref[...] = jax.nn.sigmoid(pre2).astype(o_ref.dtype)


# --------------------------- parameter plumbing ---------------------------- #
def _fuse_conv_bn(w_oihw, gamma, beta, mean, var):
    std = jnp.sqrt(var + _EPS)
    scale = gamma / std
    return w_oihw * scale[:, None, None, None], beta - mean * scale


def _bn_params(k, C):
    k1, k2, k3, k4 = jax.random.split(k, 4)
    gamma = 1.0 + 0.1 * jax.random.normal(k1, (C,), jnp.float32)
    beta = 0.1 * jax.random.normal(k2, (C,), jnp.float32)
    mean = 0.1 * jax.random.normal(k3, (C,), jnp.float32)
    var = jax.random.uniform(k4, (C,), jnp.float32, minval=0.5, maxval=1.5)
    return gamma, beta, mean, var


def make_stage_params(key, C):
    ks = jax.random.split(key, 7)
    # brb_3x3 (= _conv_bn2): conv1 1x1 (no bias) + bn1, then conv2 3x3 + bn2
    w_c1 = 0.2 * jax.random.normal(ks[0], (C, C, 1, 1), jnp.float32)
    w_c2 = 0.2 * jax.random.normal(ks[1], (C, C, 3, 3), jnp.float32)
    wa_f, ba = _fuse_conv_bn(w_c1, *_bn_params(ks[2], C))
    w3_f, b3 = _fuse_conv_bn(w_c2, *_bn_params(ks[3], C))
    # brb_1x1 (= _conv_bn): conv 1x1 (no bias) + bn
    w_11 = 0.2 * jax.random.normal(ks[4], (C, C, 1, 1), jnp.float32)
    w1_f, b1 = _fuse_conv_bn(w_11, *_bn_params(ks[5], C))
    # identity branch: plain BatchNorm2d
    g, b, m, v = _bn_params(ks[6], C)
    id_scale = g / jnp.sqrt(v + _EPS)
    id_bias = b - m * id_scale
    return dict(
        wa=wa_f, ba=ba, w3=w3_f, b3=b3, w1=w1_f, b1=b1,
        id_scale=id_scale, id_bias=id_bias,
        # HWIO copies for the pure-JAX reference / bias-map construction
        wa_hwio=jnp.transpose(wa_f, (2, 3, 1, 0)),
        w3_hwio=jnp.transpose(w3_f, (2, 3, 1, 0)),
        w1_hwio=jnp.transpose(w1_f, (2, 3, 1, 0)),
    )


def _conv_nhwc(x, w_hwio, padding):
    return lax.conv_general_dilated(
        x, w_hwio, window_strides=(1, 1), padding=padding,
        dimension_numbers=("NHWC", "HWIO", "NHWC"),
        precision=lax.Precision.HIGHEST)


def _build_block_banded(k_hwio, Wdim):
    """Fold the kx taps into a block-banded (W*Ci, W*Co) matrix per ky."""
    KY, KX, Ci, Co = k_hwio.shape
    wi = jnp.arange(Wdim)[:, None]
    wo = jnp.arange(Wdim)[None, :]
    big = jnp.zeros((KY, Wdim, Ci, Wdim, Co), k_hwio.dtype)
    for kx in range(KX):
        band = (wi == wo + kx - 1).astype(k_hwio.dtype)          # (W, W)
        big = big + band[None, :, None, :, None] * \
            k_hwio[:, kx][:, None, :, None, :]
    return big.reshape(KY, Wdim * Ci, Wdim * Co)


def build_stage_kernel_params(p, id_scale, id_bias, H, W):
    """Exact rep-fusion of one stage into (block-banded 3x3 weight, bias map)."""
    # weight part of transIII (exact): k3[o,i,ky,kx] = sum_c w3[o,c,ky,kx]*wa[c,i]
    k3 = jnp.einsum("ocyx,ci->oiyx", p["w3"], p["wa"][:, :, 0, 0])
    # 1x1 branch + identity BN -> center tap (exact)
    center = p["w1"][:, :, 0, 0] + jnp.diag(id_scale)
    k_eq = k3.at[:, :, 1, 1].add(center)
    k_hwio = jnp.transpose(k_eq, (2, 3, 1, 0))                    # (3,3,I,O)
    big_w = _build_block_banded(k_hwio, W)                        # (3, WC, WC)

    # Exact bias: the 3x3 conv zero-pads the *biased* 1x1+bn1 intermediate, so
    # the bias contribution varies near the border.  Input-independent, so it
    # is precomputed as conv(const ba image) + constant biases.
    C = p["wa"].shape[0]
    ba_img = jnp.broadcast_to(p["ba"], (1, H, W, C))
    bias_map = _conv_nhwc(ba_img, p["w3_hwio"], "SAME")[0]        # (H, W, C)
    bias_map = bias_map + (p["b3"] + p["b1"] + id_bias)
    return big_w, bias_map.reshape(H, W * C)                      # (H, WC) f32


# ------------------------------- forward ----------------------------------- #
def repblock_forward(x_nchw, p1, p2):
    N, C, H, W = x_nchw.shape
    WC = W * C

    # One-time rep-fusion (wrapper-side JAX).  Stage 2 intentionally reuses the
    # stage-1 identity BN, exactly as the PyTorch forward does.
    bw1, bm1 = build_stage_kernel_params(p1, p1["id_scale"], p1["id_bias"], H, W)
    bw2, bm2 = build_stage_kernel_params(p2, p1["id_scale"], p1["id_bias"], H, W)
    bw1 = bw1.astype(jnp.bfloat16)          # bf16 MXU operands, f32 bias/acc
    bw2 = bw2.astype(jnp.bfloat16)

    # Lane-dense per-image slab with a 1-row zero height halo: (N, H+2, WC).
    # TODO(synk): accept/emit NHWC at the block boundary to drop this relayout
    # when the surrounding model allows it.
    x = jnp.transpose(x_nchw, (0, 2, 3, 1)).reshape(N, H, WC)
    slab = jnp.zeros((N, H + 2, WC), jnp.bfloat16)
    slab = slab.at[:, 1:H + 1, :].set(x.astype(jnp.bfloat16))

    flops = N * 2 * 3 * 2 * H * WC * WC          # 2 stages x 3 taps per image
    bytes_accessed = (slab.size * 2 + (bw1.size + bw2.size) * 2
                      + (bm1.size + bm2.size) * 4 + N * H * WC * 4)

    out_slab = pl.pallas_call(
        _repblock_kernel,
        out_shape=jax.ShapeDtypeStruct((N, H, WC), jnp.float32),
        grid_spec=pltpu.PrefetchScalarGridSpec(
            num_scalar_prefetch=0,
            grid=(N,),                                   # per-image pipeline
            in_specs=[
                pl.BlockSpec((None, H + 2, WC), lambda n: (n, 0, 0)),  # slab
                pl.BlockSpec((3, WC, WC), lambda n: (0, 0, 0)),        # w1
                pl.BlockSpec((H, WC), lambda n: (0, 0)),               # bias1
                pl.BlockSpec((3, WC, WC), lambda n: (0, 0, 0)),        # w2
                pl.BlockSpec((H, WC), lambda n: (0, 0)),               # bias2
            ],
            out_specs=pl.BlockSpec((None, H, WC), lambda n: (n, 0, 0)),
            scratch_shapes=[pltpu.VMEM((H + 2, WC), jnp.float32)],
        ),
        compiler_params=pltpu.CompilerParams(
            dimension_semantics=("parallel",),   # dual-TC sharding on v7x
            vmem_limit_bytes=32 * 1024 * 1024),
        cost_estimate=pl.CostEstimate(
            flops=flops, transcendentals=N * H * WC,
            bytes_accessed=bytes_accessed),
    )(slab, bw1, bm1, bw2, bm2)

    out = out_slab.reshape(N, H, W, C)
    return jnp.transpose(out, (0, 3, 1, 2))                       # NHWC->NCHW


# ------------------------------- reference --------------------------------- #
def _ref_stage(x, p, idp, act):
    # brb_3x3 branch exactly as PyTorch: 1x1(+bn1) then zero-padded 3x3(+bn2)
    t = _conv_nhwc(x, p["wa_hwio"], "VALID") + p["ba"].reshape(1, 1, 1, -1)
    br3 = _conv_nhwc(t, p["w3_hwio"], "SAME") + p["b3"].reshape(1, 1, 1, -1)
    br1 = _conv_nhwc(x, p["w1_hwio"], "VALID") + p["b1"].reshape(1, 1, 1, -1)
    ido = x * idp["id_scale"].reshape(1, 1, 1, -1) + \
        idp["id_bias"].reshape(1, 1, 1, -1)
    out = br3 + br1 + ido
    return jnp.maximum(out, 0.0) if act == "relu" else jax.nn.sigmoid(out)


def ref_forward(x_nchw, p1, p2):
    x = jnp.transpose(x_nchw, (0, 2, 3, 1))
    out1 = _ref_stage(x, p1, p1, act="relu")
    out2 = _ref_stage(out1, p2, p1, act="sigmoid")   # identity uses stage-1 BN
    return jnp.transpose(out2, (0, 3, 1, 2))


# --------------------------------- main ------------------------------------ #
if __name__ == "__main__":
    key = jax.random.PRNGKey(0)
    kx, k1, k2 = jax.random.split(key, 3)

    N, C, H, W = 2, 8, 16, 16        # input_channel == output_channel == 8
    x_nchw = jax.random.normal(kx, (N, C, H, W), jnp.float32)

    p1 = make_stage_params(k1, C)    # brb_3x3 / brb_1x1 / brb_identity
    p2 = make_stage_params(k2, C)    # brb_3x3_2 / brb_1x1_2 (identity_2 unused)

    fwd = jax.jit(repblock_forward)
    out = jax.block_until_ready(fwd(x_nchw, p1, p2))
    ref = jax.block_until_ready(ref_forward(x_nchw, p1, p2))

    assert out.shape == (N, C, H, W)
    # bf16 MXU operands (f32 accumulation) introduce small quantization error
    # vs. the pure-f32 reference; structural bugs show up as O(0.1-1) errors.
    err = jnp.abs(out - ref)
    assert float(jnp.max(err)) < 5e-2, float(jnp.max(err))
    assert float(jnp.mean(err)) < 1e-2, float(jnp.mean(err))

    print("KERNEL_OK")
</pallas_src>

<mosaic_0001>
module attributes {stable_mosaic.version = 11 : i64} {
  func.func @_repblock_kernel(%arg0: i32, %arg1: memref<1x18x128xbf16, #tpu.memory_space<vmem>>, %arg2: memref<3x128x128xbf16, #tpu.memory_space<vmem>>, %arg3: memref<16x128xf32, #tpu.memory_space<vmem>>, %arg4: memref<3x128x128xbf16, #tpu.memory_space<vmem>>, %arg5: memref<16x128xf32, #tpu.memory_space<vmem>>, %arg6: memref<1x16x128xf32, #tpu.memory_space<vmem>>, %arg7: memref<18x128xf32, #tpu.memory_space<vmem>>) attributes {dimension_semantics = [#tpu.dimension_semantics<parallel>], iteration_bounds = array<i64: 2>, scalar_prefetch = 0 : i64, scratch_operands = 1 : i64, tpu.core_type = #tpu.core_type<tc>, window_params = [{transform_indices = @transform_0, window_bounds = array<i64: 1, 18, 128>}, {pipeline_mode = #tpu.pipeline_mode<synchronous>, transform_indices = @transform_1, window_bounds = array<i64: 3, 128, 128>}, {pipeline_mode = #tpu.pipeline_mode<synchronous>, transform_indices = @transform_2, window_bounds = array<i64: 16, 128>}, {pipeline_mode = #tpu.pipeline_mode<synchronous>, transform_indices = @transform_3, window_bounds = array<i64: 3, 128, 128>}, {pipeline_mode = #tpu.pipeline_mode<synchronous>, transform_indices = @transform_4, window_bounds = array<i64: 16, 128>}, {transform_indices = @transform_5, window_bounds = array<i64: 1, 16, 128>}]} {
    %c0 = arith.constant 0 : index
    %c0_0 = arith.constant 0 : index
    %0 = vector.load %arg3[%c0, %c0_0] : memref<16x128xf32, #tpu.memory_space<vmem>>, vector<16x128xf32>
    %c0_1 = arith.constant 0 : index
    %c0_2 = arith.constant 0 : index
    %c0_3 = arith.constant 0 : index
    %1 = vector.load %arg1[%c0_1, %c0_2, %c0_3] : memref<1x18x128xbf16, #tpu.memory_space<vmem>>, vector<1x16x128xbf16>
    %2 = vector.shape_cast %1 : vector<1x16x128xbf16> to vector<16x128xbf16>
    %c0_4 = arith.constant 0 : index
    %c0_5 = arith.constant 0 : index
    %c0_6 = arith.constant 0 : index
    %3 = vector.load %arg2[%c0_4, %c0_5, %c0_6] : memref<3x128x128xbf16, #tpu.memory_space<vmem>>, vector<1x128x128xbf16>
    %4 = vector.shape_cast %3 : vector<1x128x128xbf16> to vector<128x128xbf16>
    %cst = arith.constant dense<0.000000e+00> : vector<16x128xf32>
    %5 = tpu.matmul %2, %4, %cst {dimension_numbers = #tpu.dot_dimension_numbers<[1], [0], [0], [1], [0, 0, 1, 1], [], []>} : vector<16x128xbf16>, vector<128x128xbf16>, vector<16x128xf32> -> vector<16x128xf32>
    %6 = arith.addf %0, %5 : vector<16x128xf32>
    %c0_7 = arith.constant 0 : index
    %c1 = arith.constant 1 : index
    %c0_8 = arith.constant 0 : index
    %7 = vector.load %arg1[%c0_7, %c1, %c0_8] : memref<1x18x128xbf16, #tpu.memory_space<vmem>>, vector<1x16x128xbf16>
    %8 = vector.shape_cast %7 : vector<1x16x128xbf16> to vector<16x128xbf16>
    %c1_9 = arith.constant 1 : index
    %c0_10 = arith.constant 0 : index
    %c0_11 = arith.constant 0 : index
    %9 = vector.load %arg2[%c1_9, %c0_10, %c0_11] : memref<3x128x128xbf16, #tpu.memory_space<vmem>>, vector<1x128x128xbf16>
    %10 = vector.shape_cast %9 : vector<1x128x128xbf16> to vector<128x128xbf16>
    %cst_12 = arith.constant dense<0.000000e+00> : vector<16x128xf32>
    %11 = tpu.matmul %8, %10, %cst_12 {dimension_numbers = #tpu.dot_dimension_numbers<[1], [0], [0], [1], [0, 0, 1, 1], [], []>} : vector<16x128xbf16>, vector<128x128xbf16>, vector<16x128xf32> -> vector<16x128xf32>
    %12 = arith.addf %6, %11 : vector<16x128xf32>
    %c0_13 = arith.constant 0 : index
    %c2 = arith.constant 2 : index
    %c0_14 = arith.constant 0 : index
    %13 = vector.load %arg1[%c0_13, %c2, %c0_14] : memref<1x18x128xbf16, #tpu.memory_space<vmem>>, vector<1x16x128xbf16>
    %14 = vector.shape_cast %13 : vector<1x16x128xbf16> to vector<16x128xbf16>
    %c2_15 = arith.constant 2 : index
    %c0_16 = arith.constant 0 : index
    %c0_17 = arith.constant 0 : index
    %15 = vector.load %arg2[%c2_15, %c0_16, %c0_17] : memref<3x128x128xbf16, #tpu.memory_space<vmem>>, vector<1x128x128xbf16>
    %16 = vector.shape_cast %15 : vector<1x128x128xbf16> to vector<128x128xbf16>
    %cst_18 = arith.constant dense<0.000000e+00> : vector<16x128xf32>
    %17 = tpu.matmul %14, %16, %cst_18 {dimension_numbers = #tpu.dot_dimension_numbers<[1], [0], [0], [1], [0, 0, 1, 1], [], []>} : vector<16x128xbf16>, vector<128x128xbf16>, vector<16x128xf32> -> vector<16x128xf32>
    %18 = arith.addf %12, %17 : vector<16x128xf32>
    %cst_19 = arith.constant 0.000000e+00 : f32
    %19 = vector.broadcast %cst_19 : f32 to vector<16x128xf32>
    %20 = arith.maximumf %18, %19 : vector<16x128xf32>
    %cst_20 = arith.constant 0.000000e+00 : f32
    %21 = vector.broadcast %cst_20 : f32 to vector<1x128xf32>
    %c0_21 = arith.constant 0 : index
    %c0_22 = arith.constant 0 : index
    %22 = vector.load %arg7[%c0_21, %c0_22] : memref<18x128xf32, #tpu.memory_space<vmem>>, vector<1x128xf32>
    tpu.vector_store %arg7[%c0_21, %c0_22], %21 {strides = array<i32>} : memref<18x128xf32, #tpu.memory_space<vmem>>, vector<1x128xf32>,
    %c1_23 = arith.constant 1 : index
    %c0_24 = arith.constant 0 : index
    %23 = vector.load %arg7[%c1_23, %c0_24] : memref<18x128xf32, #tpu.memory_space<vmem>>, vector<16x128xf32>
    tpu.vector_store %arg7[%c1_23, %c0_24], %20 {strides = array<i32>} : memref<18x128xf32, #tpu.memory_space<vmem>>, vector<16x128xf32>,
    %c17 = arith.constant 17 : index
    %c0_25 = arith.constant 0 : index
    %24 = vector.load %arg7[%c17, %c0_25] : memref<18x128xf32, #tpu.memory_space<vmem>>, vector<1x128xf32>
    tpu.vector_store %arg7[%c17, %c0_25], %21 {strides = array<i32>} : memref<18x128xf32, #tpu.memory_space<vmem>>, vector<1x128xf32>,
    %c0_26 = arith.constant 0 : index
    %c0_27 = arith.constant 0 : index
    %25 = vector.load %arg5[%c0_26, %c0_27] : memref<16x128xf32, #tpu.memory_space<vmem>>, vector<16x128xf32>
    %c0_28 = arith.constant 0 : index
    %c0_29 = arith.constant 0 : index
    %26 = vector.load %arg7[%c0_28, %c0_29] : memref<18x128xf32, #tpu.memory_space<vmem>>, vector<16x128xf32>
    %27 = arith.truncf %26 : vector<16x128xf32> to vector<16x128xbf16>
    %c0_30 = arith.constant 0 : index
    %c0_31 = arith.constant 0 : index
    %c0_32 = arith.constant 0 : index
    %28 = vector.load %arg4[%c0_30, %c0_31, %c0_32] : memref<3x128x128xbf16, #tpu.memory_space<vmem>>, vector<1x128x128xbf16>
    %29 = vector.shape_cast %28 : vector<1x128x128xbf16> to vector<128x128xbf16>
    %cst_33 = arith.constant dense<0.000000e+00> : vector<16x128xf32>
    %30 = tpu.matmul %27, %29, %cst_33 {dimension_numbers = #tpu.dot_dimension_numbers<[1], [0], [0], [1], [0, 0, 1, 1], [], []>} : vector<16x128xbf16>, vector<128x128xbf16>, vector<16x128xf32> -> vector<16x128xf32>
    %31 = arith.addf %25, %30 : vector<16x128xf32>
    %c1_34 = arith.constant 1 : index
    %c0_35 = arith.constant 0 : index
    %32 = vector.load %arg7[%c1_34, %c0_35] : memref<18x128xf32, #tpu.memory_space<vmem>>, vector<16x128xf32>
    %33 = arith.truncf %32 : vector<16x128xf32> to vector<16x128xbf16>
    %c1_36 = arith.constant 1 : index
    %c0_37 = arith.constant 0 : index
    %c0_38 = arith.constant 0 : index
    %34 = vector.load %arg4[%c1_36, %c0_37, %c0_38] : memref<3x128x128xbf16, #tpu.memory_space<vmem>>, vector<1x128x128xbf16>
    %35 = vector.shape_cast %34 : vector<1x128x128xbf16> to vector<128x128xbf16>
    %cst_39 = arith.constant dense<0.000000e+00> : vector<16x128xf32>
    %36 = tpu.matmul %33, %35, %cst_39 {dimension_numbers = #tpu.dot_dimension_numbers<[1], [0], [0], [1], [0, 0, 1, 1], [], []>} : vector<16x128xbf16>, vector<128x128xbf16>, vector<16x128xf32> -> vector<16x128xf32>
    %37 = arith.addf %31, %36 : vector<16x128xf32>
    %c2_40 = arith.constant 2 : index
    %c0_41 = arith.constant 0 : index
    %38 = vector.load %arg7[%c2_40, %c0_41] : memref<18x128xf32, #tpu.memory_space<vmem>>, vector<16x128xf32>
    %39 = arith.truncf %38 : vector<16x128xf32> to vector<16x128xbf16>
    %c2_42 = arith.constant 2 : index
    %c0_43 = arith.constant 0 : index
    %c0_44 = arith.constant 0 : index
    %40 = vector.load %arg4[%c2_42, %c0_43, %c0_44] : memref<3x128x128xbf16, #tpu.memory_space<vmem>>, vector<1x128x128xbf16>
    %41 = vector.shape_cast %40 : vector<1x128x128xbf16> to vector<128x128xbf16>
    %cst_45 = arith.constant dense<0.000000e+00> : vector<16x128xf32>
    %42 = tpu.matmul %39, %41, %cst_45 {dimension_numbers = #tpu.dot_dimension_numbers<[1], [0], [0], [1], [0, 0, 1, 1], [], []>} : vector<16x128xbf16>, vector<128x128xbf16>, vector<16x128xf32> -> vector<16x128xf32>
    %43 = arith.addf %37, %42 : vector<16x128xf32>
    %44 = arith.negf %43 : vector<16x128xf32>
    %45 = math.exp %44 : vector<16x128xf32>
    %cst_46 = arith.constant 1.000000e+00 : f32
    %46 = vector.broadcast %cst_46 : f32 to vector<16x128xf32>
    %47 = arith.addf %46, %45 : vector<16x128xf32>
    %48 = arith.divf %46, %47 : vector<16x128xf32>
    %c0_47 = arith.constant 0 : index
    %c0_48 = arith.constant 0 : index
    %c0_49 = arith.constant 0 : index
    %49 = vector.load %arg6[%c0_47, %c0_48, %c0_49] : memref<1x16x128xf32, #tpu.memory_space<vmem>>, vector<1x16x128xf32>
    %50 = vector.shape_cast %49 : vector<1x16x128xf32> to vector<16x128xf32>
    %51 = vector.shape_cast %48 : vector<16x128xf32> to vector<1x16x128xf32>
    tpu.vector_store %arg6[%c0_47, %c0_48, %c0_49], %51 {strides = array<i32>} : memref<1x16x128xf32, #tpu.memory_space<vmem>>, vector<1x16x128xf32>,
    return
  }
  func.func @transform_0(%arg0: i32) -> (i32, i32, i32) {
    %c0_i32 = arith.constant 0 : i32
    %c0_i32_0 = arith.constant 0 : i32
    %c0_i32_1 = arith.constant 0 : i32
    return %arg0, %c0_i32, %c0_i32_0 : i32, i32, i32
  }
  func.func @transform_1(%arg0: i32) -> (i32, i32, i32) {
    %c0_i32 = arith.constant 0 : i32
    %c0_i32_0 = arith.constant 0 : i32
    %c0_i32_1 = arith.constant 0 : i32
    %c0_i32_2 = arith.constant 0 : i32
    return %c0_i32, %c0_i32_0, %c0_i32_1 : i32, i32, i32
  }
  func.func @transform_2(%arg0: i32) -> (i32, i32) {
    %c0_i32 = arith.constant 0 : i32
    %c0_i32_0 = arith.constant 0 : i32
    %c0_i32_1 = arith.constant 0 : i32
    return %c0_i32, %c0_i32_0 : i32, i32
  }
  func.func @transform_3(%arg0: i32) -> (i32, i32, i32) {
    %c0_i32 = arith.constant 0 : i32
    %c0_i32_0 = arith.constant 0 : i32
    %c0_i32_1 = arith.constant 0 : i32
    %c0_i32_2 = arith.constant 0 : i32
    return %c0_i32, %c0_i32_0, %c0_i32_1 : i32, i32, i32
  }
  func.func @transform_4(%arg0: i32) -> (i32, i32) {
    %c0_i32 = arith.constant 0 : i32
    %c0_i32_0 = arith.constant 0 : i32
    %c0_i32_1 = arith.constant 0 : i32
    return %c0_i32, %c0_i32_0 : i32, i32
  }
  func.func @transform_5(%arg0: i32) -> (i32, i32, i32) {
    %c0_i32 = arith.constant 0 : i32
    %c0_i32_0 = arith.constant 0 : i32
    %c0_i32_1 = arith.constant 0 : i32
    return %arg0, %c0_i32, %c0_i32_0 : i32, i32, i32
  }
}

</mosaic_0001>

<llo_original>
// kernel: repblock_forward.1
$region0: #{repblock_forward.1}
  #allocation0 [shape = 'u32[]', space=smem, size = 0x4, offset = 0x4, fixed_abs, tag = 'smem constant byte address 0x4 - core index']
  #allocation1 [shape = 'u32[144,128]{1,0:T(1,128)}', space=vmem, size = 0x12000, scoped, tag = 'internal scratch']
  #allocation2 [shape = 'f32[18,128]{1,0:T(8,128)}', space=vmem, size = 0x3000, scoped, tag = 'scratch operand']
  %s0 = inlined_call_operand.vmem [shape: bf16[2,18,128], index: 0, kind: input, shape index: {}]
  %s1 = inlined_call_operand.vmem [shape: bf16[3,128,128], index: 1, kind: input, shape index: {}]
  %s2 = inlined_call_operand.vmem [shape: f32[16,128], index: 2, kind: input, shape index: {}]
  %s3 = inlined_call_operand.vmem [shape: bf16[3,128,128], index: 3, kind: input, shape index: {}]
  %s4 = inlined_call_operand.vmem [shape: f32[16,128], index: 4, kind: input, shape index: {}]
  %s5 = inlined_call_operand.vmem [shape: f32[2,16,128], index: 5, kind: output, shape index: {}]
  %s6 = sld [smem:[#allocation0]]
  $region53: #{repblock_forward.1} parent=0
    _
  %s8 = ssub.s32 1, %s6
  %s9 = scalar_select 0, %s8, %s6
  loop: start=0, step=1, limit=4
  $region2: #{repblock_forward.1} parent=0 // loop_pre_header
    _
  $region3: #{repblock_forward.1} parent=0 // loop_header
    %s11 = sphi 0, %s15
    %p12 = scmp.ge.s32.totalorder %s11, 4
    %s21 = sphi 0, %s23
    %s24 = sphi 0, %s21
    %s25 = sphi 0, %s24
    %s41 = sphi 0, %s25
    %s45 = sphi 0, %s45
    %s47 = sphi 0, %s45
    %s48 = sphi 0, %s47
    %s62 = sphi 0, %s48
    %s66 = sphi 0, %s66
    %s68 = sphi 0, %s66
    %s69 = sphi 0, %s68
    %s83 = sphi 0, %s69
    %s87 = sphi 0, %s87
    %s89 = sphi 0, %s87
    %s90 = sphi 0, %s89
    %s104 = sphi 0, %s90
    %s108 = sphi 0, %s108
    %s110 = sphi 0, %s108
    %s111 = sphi 0, %s110
    %s125 = sphi 0, %s111
    %s131 = sphi 0, %s133
    %s134 = sphi 0, %s131
    %s135 = sphi 0, %s134
    %s151 = sphi 0, %s135
  $region4: #{repblock_forward.1} parent=0 // loop_header_branch
    %14 = sbr.rel (%p12) target = $region8
  $region5: #{repblock_forward.1} parent=0 // loop_body
    %s16 = ssub.s32 %s11, 1
    %s17 = ssub.s32 %s11, 2
    %s18 = sadd.s32 %s11, 1
    %s19 = ssub.s32 %s11, %s18
    %p20 = scmp.eq.s32.totalorder %s19, 0
    %s22 = sadd.s32 %s21, 1
    %s23 = scalar_select %p20, %s21, %s22
    %p26 = pneg %p20
    %p27 = scmp.eq.s32.totalorder %s11, 1
    %p28 = por %p26, %p27
    %p29 = scmp.ne.s32.totalorder %s21, %s24
    %p30 = scmp.eq.s32.totalorder %s11, 0
    %p31 = por %p29, %p30
    %p32 = scmp.ne.s32.totalorder %s21, %s24
    %p33 = scmp.eq.s32.totalorder %s16, 1
    %p34 = por %p32, %p33
    %p35 = scmp.ne.s32.totalorder %s24, %s25
    %p36 = scmp.eq.s32.totalorder %s16, 0
    %p37 = por %p35, %p36
    %p38 = scmp.ne.s32.totalorder %s24, %s25
    %p39 = scmp.eq.s32.totalorder %s17, 1
    %p40 = por %p38, %p39
    %p42 = scmp.ne.s32.totalorder %s25, %s41
    %p43 = scmp.eq.s32.totalorder %s17, 0
    %p44 = por %p42, %p43
    %s46 = sadd.s32 %s45, 1
    %p49 = scmp.eq.s32.totalorder %s11, 1
    %p50 = scmp.ne.s32.totalorder %s45, %s47
    %p51 = scmp.eq.s32.totalorder %s11, 0
    %p52 = por %p50, %p51
    %p53 = scmp.ne.s32.totalorder %s45, %s47
    %p54 = scmp.eq.s32.totalorder %s16, 1
    %p55 = por %p53, %p54
    %p56 = scmp.ne.s32.totalorder %s47, %s48
    %p57 = scmp.eq.s32.totalorder %s16, 0
    %p58 = por %p56, %p57
    %p59 = scmp.ne.s32.totalorder %s47, %s48
    %p60 = scmp.eq.s32.totalorder %s17, 1
    %p61 = por %p59, %p60
    %p63 = scmp.ne.s32.totalorder %s48, %s62
    %p64 = scmp.eq.s32.totalorder %s17, 0
    %p65 = por %p63, %p64
    %s67 = sadd.s32 %s66, 1
    %p70 = scmp.eq.s32.totalorder %s11, 1
    %p71 = scmp.ne.s32.totalorder %s66, %s68
    %p72 = scmp.eq.s32.totalorder %s11, 0
    %p73 = por %p71, %p72
    %p74 = scmp.ne.s32.totalorder %s66, %s68
    %p75 = scmp.eq.s32.totalorder %s16, 1
    %p76 = por %p74, %p75
    %p77 = scmp.ne.s32.totalorder %s68, %s69
    %p78 = scmp.eq.s32.totalorder %s16, 0
    %p79 = por %p77, %p78
    %p80 = scmp.ne.s32.totalorder %s68, %s69
    %p81 = scmp.eq.s32.totalorder %s17, 1
    %p82 = por %p80, %p81
    %p84 = scmp.ne.s32.totalorder %s69, %s83
    %p85 = scmp.eq.s32.totalorder %s17, 0
    %p86 = por %p84, %p85
    %s88 = sadd.s32 %s87, 1
    %p91 = scmp.eq.s32.totalorder %s11, 1
    %p92 = scmp.ne.s32.totalorder %s87, %s89
    %p93 = scmp.eq.s32.totalorder %s11, 0
    %p94 = por %p92, %p93
    %p95 = scmp.ne.s32.totalorder %s87, %s89
    %p96 = scmp.eq.s32.totalorder %s16, 1
    %p97 = por %p95, %p96
    %p98 = scmp.ne.s32.totalorder %s89, %s90
    %p99 = scmp.eq.s32.totalorder %s16, 0
    %p100 = por %p98, %p99
    %p101 = scmp.ne.s32.totalorder %s89, %s90
    %p102 = scmp.eq.s32.totalorder %s17, 1
    %p103 = por %p101, %p102
    %p105 = scmp.ne.s32.totalorder %s90, %s104
    %p106 = scmp.eq.s32.totalorder %s17, 0
    %p107 = por %p105, %p106
    %s109 = sadd.s32 %s108, 1
    %p112 = scmp.eq.s32.totalorder %s11, 1
    %p113 = scmp.ne.s32.totalorder %s108, %s110
    %p114 = scmp.eq.s32.totalorder %s11, 0
    %p115 = por %p113, %p114
    %p116 = scmp.ne.s32.totalorder %s108, %s110
    %p117 = scmp.eq.s32.totalorder %s16, 1
    %p118 = por %p116, %p117
    %p119 = scmp.ne.s32.totalorder %s110, %s111
    %p120 = scmp.eq.s32.totalorder %s16, 0
    %p121 = por %p119, %p120
    %p122 = scmp.ne.s32.totalorder %s110, %s111
    %p123 = scmp.eq.s32.totalorder %s17, 1
    %p124 = por %p122, %p123
    %p126 = scmp.ne.s32.totalorder %s111, %s125
    %p127 = scmp.eq.s32.totalorder %s17, 0
    %p128 = por %p126, %p127
    %s129 = ssub.s32 %s11, %s18
    %p130 = scmp.eq.s32.totalorder %s129, 0
    %s132 = sadd.s32 %s131, 1
    %s133 = scalar_select %p130, %s131, %s132
    %p136 = pneg %p130
    %p137 = scmp.eq.s32.totalorder %s11, 1
    %p138 = por %p136, %p137
    %p139 = scmp.ne.s32.totalorder %s131, %s134
    %p140 = scmp.eq.s32.totalorder %s11, 0
    %p141 = por %p139, %p140
    %p142 = scmp.ne.s32.totalorder %s131, %s134
    %p143 = scmp.eq.s32.totalorder %s16, 1
    %p144 = por %p142, %p143
    %p145 = scmp.ne.s32.totalorder %s134, %s135
    %p146 = scmp.eq.s32.totalorder %s16, 0
    %p147 = por %p145, %p146
    %p148 = scmp.ne.s32.totalorder %s134, %s135
    %p149 = scmp.eq.s32.totalorder %s17, 1
    %p150 = por %p148, %p149
    %p152 = scmp.ne.s32.totalorder %s135, %s151
    %p153 = scmp.eq.s32.totalorder %s17, 0
    %p154 = por %p152, %p153
    %p155 = scmp.le.s32.totalorder 1, %s11
    %p156 = scmp.lt.s32.totalorder %s11, 3
    %p157 = pnand %p155, %p156
    %p158 = pneg %p157
    // Predicated region
    $region9: #{repblock_forward.1} parent=5 // pred_check
      _
    $region10: #{repblock_forward.1} parent=5 // pred_check_branch
      %160 = sbr.rel (%p157) target = $region12
    $region11: #{repblock_forward.1} parent=5 // pred_region
      %s161 = ssub.s32 %s11, 1
      // Predicated region
      $region13: #{repblock_forward.1} parent=11 // pred_check
        %p162 = pneg %p58
      $region14: #{repblock_forward.1} parent=11 // pred_check_branch
        %164 = sbr.rel (%p162) target = $region16
      $region15: #{repblock_forward.1} parent=11 // pred_region
        _
      $region16: #{repblock_forward.1} parent=11 // pred_fallthru
        _
      // Predicated region
      $region17: #{repblock_forward.1} parent=11 // pred_check
        %p165 = pneg %p79
      $region18: #{repblock_forward.1} parent=11 // pred_check_branch
        %167 = sbr.rel (%p165) target = $region20
      $region19: #{repblock_forward.1} parent=11 // pred_region
        _
      $region20: #{repblock_forward.1} parent=11 // pred_fallthru
        _
      // Predicated region
      $region21: #{repblock_forward.1} parent=11 // pred_check
        %p168 = pneg %p100
      $region22: #{repblock_forward.1} parent=11 // pred_check_branch
        %170 = sbr.rel (%p168) target = $region24
      $region23: #{repblock_forward.1} parent=11 // pred_region
        _
      $region24: #{repblock_forward.1} parent=11 // pred_fallthru
        _
      // Predicated region
      $region25: #{repblock_forward.1} parent=11 // pred_check
        %p171 = pneg %p121
      $region26: #{repblock_forward.1} parent=11 // pred_check_branch
        %173 = sbr.rel (%p171) target = $region28
      $region27: #{repblock_forward.1} parent=11 // pred_region
        _
      $region28: #{repblock_forward.1} parent=11 // pred_fallthru
        _
    $region12: #{repblock_forward.1} parent=5 // pred_fallthru
      _
    %p174 = scmp.lt.s32.totalorder %s11, 2
    // Predicated region
    $region29: #{repblock_forward.1} parent=5 // pred_check
      %p175 = pneg %p174
    $region30: #{repblock_forward.1} parent=5 // pred_check_branch
      %177 = sbr.rel (%p175) target = $region32
    $region31: #{repblock_forward.1} parent=5 // pred_region
      // Predicated region
      $region33: #{repblock_forward.1} parent=31 // pred_check
        %p178 = pneg %p31
      $region34: #{repblock_forward.1} parent=31 // pred_check_branch
        %180 = sbr.rel (%p178) target = $region36
      $region35: #{repblock_forward.1} parent=31 // pred_region
        %p181 = scmp.lt.s32.totalorder %s11, 1
        %s182 = scalar_select %p181, %s11, 1
        %s183 = smul.addr %s182, 3
        %s184 = smul.addr %s183, 4
        %s185 = scalar_lea.vmem %s0, %s184
      $region36: #{repblock_forward.1} parent=31 // pred_fallthru
        _
    $region32: #{repblock_forward.1} parent=5 // pred_fallthru
      _
    %p186 = scmp.le.s32.totalorder 1, %s11
    %p187 = scmp.lt.s32.totalorder %s11, 3
    %p188 = pnand %p186, %p187
    %p189 = pneg %p188
    // Predicated region
    $region37: #{repblock_forward.1} parent=5 // pred_check
      _
    $region38: #{repblock_forward.1} parent=5 // pred_check_branch
      %191 = sbr.rel (%p188) target = $region40
    $region39: #{repblock_forward.1} parent=5 // pred_region
      %s192 = ssub.s32 %s11, 1
      %p193 = scmp.lt.s32.totalorder %s16, 1
      %s194 = scalar_select %p193, %s16, 1
      %s195 = smul.addr %s194, 3
      %s196 = smul.addr %s195, 4
      %s197 = scalar_lea.vmem %s0, %s196
      %p198 = pneg %p37
      %p199 = pneg %p34
      %p200 = pneg %p58
      %p201 = pneg %p55
      %p202 = pneg %p79
      %p203 = pneg %p76
      %p204 = pneg %p100
      %p205 = pneg %p97
      %p206 = pneg %p121
      %p207 = pneg %p118
      %p208 = pneg %p147
      %p209 = pneg %p144
      %p210 = scmp.lt.s32.totalorder %s16, 1
      %s211 = scalar_select %p210, %s16, 1
      %s212 = smul.addr %s211, 2
      %s213 = smul.addr %s212, 8
      %s214 = scalar_lea.vmem %s5, %s213
      %p215 = scmp.lt.s32.totalorder %s16, 1
      %s216 = scalar_select %p215, %s16, 1
      %s217 = smul.addr %s216, 3
      %s218 = smul.addr %s217, 4
      %s219 = scalar_lea.vmem %s0, %s218
      %p220 = scmp.lt.s32.totalorder %s16, 1
      %s221 = scalar_select %p220, %s16, 1
      %s222 = smul.addr %s221, 2
      %s223 = smul.addr %s222, 8
      %s224 = scalar_lea.vmem %s5, %s223
      %v226 = vld [vmem:[%s2] sm:$0xff]
      %v227 = vld [vmem:[%s2 + $0x8] sm:$0xff]
      %v228 = vld [vmem:[%s219] sm:$0xf]
      %v229 = vld [vmem:[%s219 + $0x4] sm:$0xf]
      %v230 = vld [vmem:[%s1] sm:$0xf]
      %v231 = vld [vmem:[%s1 + $0x4] sm:$0xf]
      %v232 = vld [vmem:[%s1 + $0x8] sm:$0xf]
      %v233 = vld [vmem:[%s1 + $0xc] sm:$0xf]
      %v234 = vld [vmem:[%s1 + $0x10] sm:$0xf]
      %v235 = vld [vmem:[%s1 + $0x14] sm:$0xf]
      %v236 = vld [vmem:[%s1 + $0x18] sm:$0xf]
      %v237 = vld [vmem:[%s1 + $0x1c] sm:$0xf]
      %v238 = vld [vmem:[%s1 + $0x20] sm:$0xf]
      %v239 = vld [vmem:[%s1 + $0x24] sm:$0xf]
      %v240 = vld [vmem:[%s1 + $0x28] sm:$0xf]
      %v241 = vld [vmem:[%s1 + $0x2c] sm:$0xf]
      %v242 = vld [vmem:[%s1 + $0x30] sm:$0xf]
      %v243 = vld [vmem:[%s1 + $0x34] sm:$0xf]
      %v244 = vld [vmem:[%s1 + $0x38] sm:$0xf]
      %v245 = vld [vmem:[%s1 + $0x3c] sm:$0xf]
      %v248 = vunpack.c.l.b16 %v228
      %v249 = vunpack.c.l.b16 %v229
      %v250 = vpack.c.b16 %v249, %v248
      %v268 = vunpack.c.l.b16 %v230
      %v269 = vunpack.c.l.b16 %v231
      %v270 = vunpack.c.l.b16 %v232
      %v271 = vunpack.c.l.b16 %v233
      %v272 = vunpack.c.l.b16 %v234
      %v273 = vunpack.c.l.b16 %v235
      %v274 = vunpack.c.l.b16 %v236
      %v275 = vunpack.c.l.b16 %v237
      %v276 = vunpack.c.l.b16 %v238
      %v277 = vunpack.c.l.b16 %v239
      %v278 = vunpack.c.l.b16 %v240
      %v279 = vunpack.c.l.b16 %v241
      %v280 = vunpack.c.l.b16 %v242
      %v281 = vunpack.c.l.b16 %v243
      %v282 = vunpack.c.l.b16 %v244
      %v283 = vunpack.c.l.b16 %v245
      %v284 = vpack.c.b16 %v269, %v268
      %v285 = vpack.c.b16 %v271, %v270
      %v286 = vpack.c.b16 %v273, %v272
      %v287 = vpack.c.b16 %v275, %v274
      %v288 = vpack.c.b16 %v277, %v276
      %v289 = vpack.c.b16 %v279, %v278
      %v290 = vpack.c.b16 %v281, %v280
      %v291 = vpack.c.b16 %v283, %v282
      %300 = vmatprep.subr.bf16.mxu0 0
      %301 = vmatpush1.bf16.msra.mxu0 %v291
      %302 = vmatprep.subr.bf16.mxu0 0
      %303 = vmatpush1.bf16.msra.mxu0 %v290
      %304 = vmatprep.subr.bf16.mxu0 0
      %305 = vmatpush1.bf16.msra.mxu0 %v289
      %306 = vmatprep.subr.bf16.mxu0 0
      %307 = vmatpush1.bf16.msra.mxu0 %v288
      %308 = vmatprep.subr.bf16.mxu0 0
      %309 = vmatpush1.bf16.msra.mxu0 %v287
      %310 = vmatprep.subr.bf16.mxu0 0
      %311 = vmatpush1.bf16.msra.mxu0 %v286
      %312 = vmatprep.subr.bf16.mxu0 0
      %313 = vmatpush1.bf16.msra.mxu0 %v285
      %314 = vmatprep.subr.bf16.mxu0 0
      %315 = vmatpush1.bf16.msra.mxu0 %v284
      %316 = vmatprep.subr.bf16.mxu0 0
      %317 = vmatpush2.bf16.msra.mxu0 0
      %318 = vmatprep.subr.bf16.mxu0 0
      %319 = vmatpush2.bf16.msra.mxu0 0
      %320 = vmatprep.subr.bf16.mxu0 0
      %321 = vmatpush2.bf16.msra.mxu0 0
      %322 = vmatprep.subr.bf16.mxu0 0
      %323 = vmatpush2.bf16.msra.mxu0 0
      %324 = vmatprep.subr.bf16.mxu0 0
      %325 = vmatpush2.bf16.msra.mxu0 0
      %326 = vmatprep.subr.bf16.mxu0 0
      %327 = vmatpush2.bf16.msra.mxu0 0
      %328 = vmatprep.subr.bf16.mxu0 0
      %329 = vmatpush2.bf16.msra.mxu0 0
      %330 = vmatprep.subr.bf16.mxu0 0
      %331 = vmatpush2.bf16.msra.mxu0 0
      %332 = vmatprep.mubr.bf16.mxu0 0
      %333 = vmatmul.mubr.bf16.gmra.mxu0 %v250
      %v334 = vpop.f32.mrf.mxu0
      %v335 = vadd.f32 0.0, %v334
      %v336 = vpop.f32.mrf.mxu0
      %v337 = vpop.f32.mrf.mxu0
      %v338 = vadd.f32 0.0, %v337
      %v339 = vpop.f32.mrf.mxu0
      %340 = vdwg.mxu0
      %v341 = vadd.f32 %v226, %v335
      %v342 = vadd.f32 %v227, %v338
      %v343 = vld [vmem:[%s219] sm:$0xf]
      %v344 = vld [vmem:[%s219 + $0x4] sm:$0xf]
      %v345 = vld [vmem:[%s219 + $0x8] sm:$0x1]
      %s346 = scalar_lea.vmem %s1, 64
      %v347 = vld [vmem:[%s346] sm:$0xf]
      %v348 = vld [vmem:[%s346 + $0x4] sm:$0xf]
      %v349 = vld [vmem:[%s346 + $0x8] sm:$0xf]
      %v350 = vld [vmem:[%s346 + $0xc] sm:$0xf]
      %v351 = vld [vmem:[%s346 + $0x10] sm:$0xf]
      %v352 = vld [vmem:[%s346 + $0x14] sm:$0xf]
      %v353 = vld [vmem:[%s346 + $0x18] sm:$0xf]
      %v354 = vld [vmem:[%s346 + $0x1c] sm:$0xf]
      %v355 = vld [vmem:[%s346 + $0x20] sm:$0xf]
      %v356 = vld [vmem:[%s346 + $0x24] sm:$0xf]
      %v357 = vld [vmem:[%s346 + $0x28] sm:$0xf]
      %v358 = vld [vmem:[%s346 + $0x2c] sm:$0xf]
      %v359 = vld [vmem:[%s346 + $0x30] sm:$0xf]
      %v360 = vld [vmem:[%s346 + $0x34] sm:$0xf]
      %v361 = vld [vmem:[%s346 + $0x38] sm:$0xf]
      %v362 = vld [vmem:[%s346 + $0x3c] sm:$0xf]
      %v366 = vunpack.c.l.b16 %v343
      %v367 = vunpack.c.l.b16 %v344
      %v368 = vunpack.c.l.b16 %v345
      %v369 = vpack.c.b16 %v367, %v366
      %v370 = vpack.c.b16 %v368, %v368
      %vm371 = vsmask.f32 7424
      %v373 = vshrl.u32 %v369, 16
      %v375 = vshll.u32 %v369, 16
      %v377 = vrot.slane %v375, 1
      %v378 = vor.u32 %v373, %v377
      %v380 = vshll.u32 %v370, 16
      %v382 = vrot.slane %v380, 1
      %v383 = vsel %vm371, %v378, %v382
      %v401 = vunpack.c.l.b16 %v347
      %v402 = vunpack.c.l.b16 %v348
      %v403 = vunpack.c.l.b16 %v349
      %v404 = vunpack.c.l.b16 %v350
      %v405 = vunpack.c.l.b16 %v351
      %v406 = vunpack.c.l.b16 %v352
      %v407 = vunpack.c.l.b16 %v353
      %v408 = vunpack.c.l.b16 %v354
      %v409 = vunpack.c.l.b16 %v355
      %v410 = vunpack.c.l.b16 %v356
      %v411 = vunpack.c.l.b16 %v357
      %v412 = vunpack.c.l.b16 %v358
      %v413 = vunpack.c.l.b16 %v359
      %v414 = vunpack.c.l.b16 %v360
      %v415 = vunpack.c.l.b16 %v361
      %v416 = vunpack.c.l.b16 %v362
      %v417 = vpack.c.b16 %v402, %v401
      %v418 = vpack.c.b16 %v404, %v403
      %v419 = vpack.c.b16 %v406, %v405
      %v420 = vpack.c.b16 %v408, %v407
      %v421 = vpack.c.b16 %v410, %v409
      %v422 = vpack.c.b16 %v412, %v411
      %v423 = vpack.c.b16 %v414, %v413
      %v424 = vpack.c.b16 %v416, %v415
      %433 = vmatprep.subr.bf16.mxu0 0
      %434 = vmatpush1.bf16.msra.mxu0 %v424
      %435 = vmatprep.subr.bf16.mxu0 0
      %436 = vmatpush1.bf16.msra.mxu0 %v423
      %437 = vmatprep.subr.bf16.mxu0 0
      %438 = vmatpush1.bf16.msra.mxu0 %v422
      %439 = vmatprep.subr.bf16.mxu0 0
      %440 = vmatpush1.bf16.msra.mxu0 %v421
      %441 = vmatprep.subr.bf16.mxu0 0
      %442 = vmatpush1.bf16.msra.mxu0 %v420
      %443 = vmatprep.subr.bf16.mxu0 0
      %444 = vmatpush1.bf16.msra.mxu0 %v419
      %445 = vmatprep.subr.bf16.mxu0 0
      %446 = vmatpush1.bf16.msra.mxu0 %v418
      %447 = vmatprep.subr.bf16.mxu0 0
      %448 = vmatpush1.bf16.msra.mxu0 %v417
      %449 = vmatprep.subr.bf16.mxu0 0
      %450 = vmatpush2.bf16.msra.mxu0 0
      %451 = vmatprep.subr.bf16.mxu0 0
      %452 = vmatpush2.bf16.msra.mxu0 0
      %453 = vmatprep.subr.bf16.mxu0 0
      %454 = vmatpush2.bf16.msra.mxu0 0
      %455 = vmatprep.subr.bf16.mxu0 0
      %456 = vmatpush2.bf16.msra.mxu0 0
      %457 = vmatprep.subr.bf16.mxu0 0
      %458 = vmatpush2.bf16.msra.mxu0 0
      %459 = vmatprep.subr.bf16.mxu0 0
      %460 = vmatpush2.bf16.msra.mxu0 0
      %461 = vmatprep.subr.bf16.mxu0 0
      %462 = vmatpush2.bf16.msra.mxu0 0
      %463 = vmatprep.subr.bf16.mxu0 0
      %464 = vmatpush2.bf16.msra.mxu0 0
      %465 = vmatprep.mubr.bf16.mxu0 0
      %466 = vmatmul.mubr.bf16.gmra.mxu0 %v383
      %v467 = vpop.f32.mrf.mxu0
      %v468 = vadd.f32 0.0, %v467
      %v469 = vpop.f32.mrf.mxu0
      %v470 = vpop.f32.mrf.mxu0
      %v471 = vadd.f32 0.0, %v470
      %v472 = vpop.f32.mrf.mxu0
      %473 = vdwg.mxu0
      %v474 = vadd.f32 %v341, %v468
      %v475 = vadd.f32 %v342, %v471
      %v476 = vld [vmem:[%s219] sm:$0xe]
      %s477 = scalar_lea.vmem %s1, 128
      %v478 = vld [vmem:[%s477] sm:$0xf]
      %v479 = vld [vmem:[%s477 + $0x4] sm:$0xf]
      %v480 = vld [vmem:[%s477 + $0x8] sm:$0xf]
      %v481 = vld [vmem:[%s477 + $0xc] sm:$0xf]
      %v482 = vld [vmem:[%s477 + $0x10] sm:$0xf]
      %v483 = vld [vmem:[%s477 + $0x14] sm:$0xf]
      %v484 = vld [vmem:[%s477 + $0x18] sm:$0xf]
      %v485 = vld [vmem:[%s477 + $0x1c] sm:$0xf]
      %v486 = vld [vmem:[%s477 + $0x20] sm:$0xf]
      %v487 = vld [vmem:[%s477 + $0x24] sm:$0xf]
      %v488 = vld [vmem:[%s477 + $0x28] sm:$0xf]
      %v489 = vld [vmem:[%s477 + $0x2c] sm:$0xf]
      %v490 = vld [vmem:[%s477 + $0x30] sm:$0xf]
      %v491 = vld [vmem:[%s477 + $0x34] sm:$0xf]
      %v492 = vld [vmem:[%s477 + $0x38] sm:$0xf]
      %v493 = vld [vmem:[%s477 + $0x3c] sm:$0xf]
      %v495 = vunpack.c.l.b16 %v476
      %v496 = vpack.c.b16 %v367, %v495
      %vm497 = vcmask 1046528
      %v498 = vrot.slane %v496, 1
      %v499 = vrot.slane %v370, 1
      %v500 = vsel %vm497, %v498, %v499
      %v518 = vunpack.c.l.b16 %v478
      %v519 = vunpack.c.l.b16 %v479
      %v520 = vunpack.c.l.b16 %v480
      %v521 = vunpack.c.l.b16 %v481
      %v522 = vunpack.c.l.b16 %v482
      %v523 = vunpack.c.l.b16 %v483
      %v524 = vunpack.c.l.b16 %v484
      %v525 = vunpack.c.l.b16 %v485
      %v526 = vunpack.c.l.b16 %v486
      %v527 = vunpack.c.l.b16 %v487
      %v528 = vunpack.c.l.b16 %v488
      %v529 = vunpack.c.l.b16 %v489
      %v530 = vunpack.c.l.b16 %v490
      %v531 = vunpack.c.l.b16 %v491
      %v532 = vunpack.c.l.b16 %v492
      %v533 = vunpack.c.l.b16 %v493
      %v534 = vpack.c.b16 %v519, %v518
      %v535 = vpack.c.b16 %v521, %v520
      %v536 = vpack.c.b16 %v523, %v522
      %v537 = vpack.c.b16 %v525, %v524
      %v538 = vpack.c.b16 %v527, %v526
      %v539 = vpack.c.b16 %v529, %v528
      %v540 = vpack.c.b16 %v531, %v530
      %v541 = vpack.c.b16 %v533, %v532
      %550 = vmatprep.subr.bf16.mxu0 0
      %551 = vmatpush1.bf16.msra.mxu0 %v541
      %552 = vmatprep.subr.bf16.mxu0 0
      %553 = vmatpush1.bf16.msra.mxu0 %v540
      %554 = vmatprep.subr.bf16.mxu0 0
      %555 = vmatpush1.bf16.msra.mxu0 %v539
      %556 = vmatprep.subr.bf16.mxu0 0
      %557 = vmatpush1.bf16.msra.mxu0 %v538
      %558 = vmatprep.subr.bf16.mxu0 0
      %559 = vmatpush1.bf16.msra.mxu0 %v537
      %560 = vmatprep.subr.bf16.mxu0 0
      %561 = vmatpush1.bf16.msra.mxu0 %v536
      %562 = vmatprep.subr.bf16.mxu0 0
      %563 = vmatpush1.bf16.msra.mxu0 %v535
      %564 = vmatprep.subr.bf16.mxu0 0
      %565 = vmatpush1.bf16.msra.mxu0 %v534
      %566 = vmatprep.subr.bf16.mxu0 0
      %567 = vmatpush2.bf16.msra.mxu0 0
      %568 = vmatprep.subr.bf16.mxu0 0
      %569 = vmatpush2.bf16.msra.mxu0 0
      %570 = vmatprep.subr.bf16.mxu0 0
      %571 = vmatpush2.bf16.msra.mxu0 0
      %572 = vmatprep.subr.bf16.mxu0 0
      %573 = vmatpush2.bf16.msra.mxu0 0
      %574 = vmatprep.subr.bf16.mxu0 0
      %575 = vmatpush2.bf16.msra.mxu0 0
      %576 = vmatprep.subr.bf16.mxu0 0
      %577 = vmatpush2.bf16.msra.mxu0 0
      %578 = vmatprep.subr.bf16.mxu0 0
      %579 = vmatpush2.bf16.msra.mxu0 0
      %580 = vmatprep.subr.bf16.mxu0 0
      %581 = vmatpush2.bf16.msra.mxu0 0
      %582 = vmatprep.mubr.bf16.mxu0 0
      %583 = vmatmul.mubr.bf16.gmra.mxu0 %v500
      %v584 = vpop.f32.mrf.mxu0
      %v585 = vadd.f32 0.0, %v584
      %v586 = vpop.f32.mrf.mxu0
      %v587 = vpop.f32.mrf.mxu0
      %v588 = vadd.f32 0.0, %v587
      %v589 = vpop.f32.mrf.mxu0
      %590 = vdwg.mxu0
      %v591 = vadd.f32 %v474, %v585
      %v592 = vadd.f32 %v475, %v588
      %v593 = vmax.f32 %v591, 0.0
      %v594 = vmax.f32 %v592, 0.0
      %595 = vst [vmem:[#allocation2] sm:$0x1] 0.0
      %596 = vst [vmem:[#allocation2 + $0x1] sm:$0xff] %v593
      %597 = vst [vmem:[#allocation2 + $0x9] sm:$0xff] %v594
      %598 = vst [vmem:[#allocation2 + $0x11] sm:$0x1] 0.0
      %v599 = vld [vmem:[%s4] sm:$0xff]
      %v600 = vld [vmem:[%s4 + $0x8] sm:$0xff]
      %v601 = vld [vmem:[#allocation2] sm:$0xff]
      %v602 = vld [vmem:[#allocation2 + $0x8] sm:$0xff]
      %v603 = vpack.c.bf16 %v602, %v601
      %v604 = vld [vmem:[%s3] sm:$0xf]
      %v605 = vld [vmem:[%s3 + $0x4] sm:$0xf]
      %v606 = vld [vmem:[%s3 + $0x8] sm:$0xf]
      %v607 = vld [vmem:[%s3 + $0xc] sm:$0xf]
      %v608 = vld [vmem:[%s3 + $0x10] sm:$0xf]
      %v609 = vld [vmem:[%s3 + $0x14] sm:$0xf]
      %v610 = vld [vmem:[%s3 + $0x18] sm:$0xf]
      %v611 = vld [vmem:[%s3 + $0x1c] sm:$0xf]
      %v612 = vld [vmem:[%s3 + $0x20] sm:$0xf]
      %v613 = vld [vmem:[%s3 + $0x24] sm:$0xf]
      %v614 = vld [vmem:[%s3 + $0x28] sm:$0xf]
      %v615 = vld [vmem:[%s3 + $0x2c] sm:$0xf]
      %v616 = vld [vmem:[%s3 + $0x30] sm:$0xf]
      %v617 = vld [vmem:[%s3 + $0x34] sm:$0xf]
      %v618 = vld [vmem:[%s3 + $0x38] sm:$0xf]
      %v619 = vld [vmem:[%s3 + $0x3c] sm:$0xf]
      %v636 = vunpack.c.l.b16 %v604
      %v637 = vunpack.c.l.b16 %v605
      %v638 = vunpack.c.l.b16 %v606
      %v639 = vunpack.c.l.b16 %v607
      %v640 = vunpack.c.l.b16 %v608
      %v641 = vunpack.c.l.b16 %v609
      %v642 = vunpack.c.l.b16 %v610
      %v643 = vunpack.c.l.b16 %v611
      %v644 = vunpack.c.l.b16 %v612
      %v645 = vunpack.c.l.b16 %v613
      %v646 = vunpack.c.l.b16 %v614
      %v647 = vunpack.c.l.b16 %v615
      %v648 = vunpack.c.l.b16 %v616
      %v649 = vunpack.c.l.b16 %v617
      %v650 = vunpack.c.l.b16 %v618
      %v651 = vunpack.c.l.b16 %v619
      %v652 = vpack.c.b16 %v637, %v636
      %v653 = vpack.c.b16 %v639, %v638
      %v654 = vpack.c.b16 %v641, %v640
      %v655 = vpack.c.b16 %v643, %v642
      %v656 = vpack.c.b16 %v645, %v644
      %v657 = vpack.c.b16 %v647, %v646
      %v658 = vpack.c.b16 %v649, %v648
      %v659 = vpack.c.b16 %v651, %v650
      %668 = vmatprep.subr.bf16.mxu0 0
      %669 = vmatpush1.bf16.msra.mxu0 %v659
      %670 = vmatprep.subr.bf16.mxu0 0
      %671 = vmatpush1.bf16.msra.mxu0 %v658
      %672 = vmatprep.subr.bf16.mxu0 0
      %673 = vmatpush1.bf16.msra.mxu0 %v657
      %674 = vmatprep.subr.bf16.mxu0 0
      %675 = vmatpush1.bf16.msra.mxu0 %v656
      %676 = vmatprep.subr.bf16.mxu0 0
      %677 = vmatpush1.bf16.msra.mxu0 %v655
      %678 = vmatprep.subr.bf16.mxu0 0
      %679 = vmatpush1.bf16.msra.mxu0 %v654
      %680 = vmatprep.subr.bf16.mxu0 0
      %681 = vmatpush1.bf16.msra.mxu0 %v653
      %682 = vmatprep.subr.bf16.mxu0 0
      %683 = vmatpush1.bf16.msra.mxu0 %v652
      %684 = vmatprep.subr.bf16.mxu0 0
      %685 = vmatpush2.bf16.msra.mxu0 0
      %686 = vmatprep.subr.bf16.mxu0 0
      %687 = vmatpush2.bf16.msra.mxu0 0
      %688 = vmatprep.subr.bf16.mxu0 0
      %689 = vmatpush2.bf16.msra.mxu0 0
      %690 = vmatprep.subr.bf16.mxu0 0
      %691 = vmatpush2.bf16.msra.mxu0 0
      %692 = vmatprep.subr.bf16.mxu0 0
      %693 = vmatpush2.bf16.msra.mxu0 0
      %694 = vmatprep.subr.bf16.mxu0 0
      %695 = vmatpush2.bf16.msra.mxu0 0
      %696 = vmatprep.subr.bf16.mxu0 0
      %697 = vmatpush2.bf16.msra.mxu0 0
      %698 = vmatprep.subr.bf16.mxu0 0
      %699 = vmatpush2.bf16.msra.mxu0 0
      %700 = vmatprep.mubr.bf16.mxu0 0
      %701 = vmatmul.mubr.bf16.gmra.mxu0 %v603
      %v702 = vpop.f32.mrf.mxu0
      %v703 = vadd.f32 0.0, %v702
      %v704 = vpop.f32.mrf.mxu0
      %v705 = vpop.f32.mrf.mxu0
      %v706 = vadd.f32 0.0, %v705
      %v707 = vpop.f32.mrf.mxu0
      %708 = vdwg.mxu0
      %v709 = vadd.f32 %v599, %v703
      %v710 = vadd.f32 %v600, %v706
      %v711 = vld [vmem:[#allocation2 + $0x1] sm:$0xff]
      %v712 = vld [vmem:[#allocation2 + $0x9] sm:$0xff]
      %v713 = vpack.c.bf16 %v712, %v711
      %s714 = scalar_lea.vmem %s3, 64
      %v715 = vld [vmem:[%s714] sm:$0xf]
      %v716 = vld [vmem:[%s714 + $0x4] sm:$0xf]
      %v717 = vld [vmem:[%s714 + $0x8] sm:$0xf]
      %v718 = vld [vmem:[%s714 + $0xc] sm:$0xf]
      %v719 = vld [vmem:[%s714 + $0x10] sm:$0xf]
      %v720 = vld [vmem:[%s714 + $0x14] sm:$0xf]
      %v721 = vld [vmem:[%s714 + $0x18] sm:$0xf]
      %v722 = vld [vmem:[%s714 + $0x1c] sm:$0xf]
      %v723 = vld [vmem:[%s714 + $0x20] sm:$0xf]
      %v724 = vld [vmem:[%s714 + $0x24] sm:$0xf]
      %v725 = vld [vmem:[%s714 + $0x28] sm:$0xf]
      %v726 = vld [vmem:[%s714 + $0x2c] sm:$0xf]
      %v727 = vld [vmem:[%s714 + $0x30] sm:$0xf]
      %v728 = vld [vmem:[%s714 + $0x34] sm:$0xf]
      %v729 = vld [vmem:[%s714 + $0x38] sm:$0xf]
      %v730 = vld [vmem:[%s714 + $0x3c] sm:$0xf]
      %v747 = vunpack.c.l.b16 %v715
      %v748 = vunpack.c.l.b16 %v716
      %v749 = vunpack.c.l.b16 %v717
      %v750 = vunpack.c.l.b16 %v718
      %v751 = vunpack.c.l.b16 %v719
      %v752 = vunpack.c.l.b16 %v720
      %v753 = vunpack.c.l.b16 %v721
      %v754 = vunpack.c.l.b16 %v722
      %v755 = vunpack.c.l.b16 %v723
      %v756 = vunpack.c.l.b16 %v724
      %v757 = vunpack.c.l.b16 %v725
      %v758 = vunpack.c.l.b16 %v726
      %v759 = vunpack.c.l.b16 %v727
      %v760 = vunpack.c.l.b16 %v728
      %v761 = vunpack.c.l.b16 %v729
      %v762 = vunpack.c.l.b16 %v730
      %v763 = vpack.c.b16 %v748, %v747
      %v764 = vpack.c.b16 %v750, %v749
      %v765 = vpack.c.b16 %v752, %v751
      %v766 = vpack.c.b16 %v754, %v753
      %v767 = vpack.c.b16 %v756, %v755
      %v768 = vpack.c.b16 %v758, %v757
      %v769 = vpack.c.b16 %v760, %v759
      %v770 = vpack.c.b16 %v762, %v761
      %779 = vmatprep.subr.bf16.mxu0 0
      %780 = vmatpush1.bf16.msra.mxu0 %v770
      %781 = vmatprep.subr.bf16.mxu0 0
      %782 = vmatpush1.bf16.msra.mxu0 %v769
      %783 = vmatprep.subr.bf16.mxu0 0
      %784 = vmatpush1.bf16.msra.mxu0 %v768
      %785 = vmatprep.subr.bf16.mxu0 0
      %786 = vmatpush1.bf16.msra.mxu0 %v767
      %787 = vmatprep.subr.bf16.mxu0 0
      %788 = vmatpush1.bf16.msra.mxu0 %v766
      %789 = vmatprep.subr.bf16.mxu0 0
      %790 = vmatpush1.bf16.msra.mxu0 %v765
      %791 = vmatprep.subr.bf16.mxu0 0
      %792 = vmatpush1.bf16.msra.mxu0 %v764
      %793 = vmatprep.subr.bf16.mxu0 0
      %794 = vmatpush1.bf16.msra.mxu0 %v763
      %795 = vmatprep.subr.bf16.mxu0 0
      %796 = vmatpush2.bf16.msra.mxu0 0
      %797 = vmatprep.subr.bf16.mxu0 0
      %798 = vmatpush2.bf16.msra.mxu0 0
      %799 = vmatprep.subr.bf16.mxu0 0
      %800 = vmatpush2.bf16.msra.mxu0 0
      %801 = vmatprep.subr.bf16.mxu0 0
      %802 = vmatpush2.bf16.msra.mxu0 0
      %803 = vmatprep.subr.bf16.mxu0 0
      %804 = vmatpush2.bf16.msra.mxu0 0
      %805 = vmatprep.subr.bf16.mxu0 0
      %806 = vmatpush2.bf16.msra.mxu0 0
      %807 = vmatprep.subr.bf16.mxu0 0
      %808 = vmatpush2.bf16.msra.mxu0 0
      %809 = vmatprep.subr.bf16.mxu0 0
      %810 = vmatpush2.bf16.msra.mxu0 0
      %811 = vmatprep.mubr.bf16.mxu0 0
      %812 = vmatmul.mubr.bf16.gmra.mxu0 %v713
      %v813 = vpop.f32.mrf.mxu0
      %v814 = vadd.f32 0.0, %v813
      %v815 = vpop.f32.mrf.mxu0
      %v816 = vpop.f32.mrf.mxu0
      %v817 = vadd.f32 0.0, %v816
      %v818 = vpop.f32.mrf.mxu0
      %819 = vdwg.mxu0
      %v820 = vadd.f32 %v709, %v814
      %v821 = vadd.f32 %v710, %v817
      %v822 = vld [vmem:[#allocation2 + $0x2] sm:$0xff]
      %v823 = vld [vmem:[#allocation2 + $0xa] sm:$0xff]
      %v824 = vpack.c.bf16 %v823, %v822
      %s825 = scalar_lea.vmem %s3, 128
      %v826 = vld [vmem:[%s825] sm:$0xf]
      %v827 = vld [vmem:[%s825 + $0x4] sm:$0xf]
      %v828 = vld [vmem:[%s825 + $0x8] sm:$0xf]
      %v829 = vld [vmem:[%s825 + $0xc] sm:$0xf]
      %v830 = vld [vmem:[%s825 + $0x10] sm:$0xf]
      %v831 = vld [vmem:[%s825 + $0x14] sm:$0xf]
      %v832 = vld [vmem:[%s825 + $0x18] sm:$0xf]
      %v833 = vld [vmem:[%s825 + $0x1c] sm:$0xf]
      %v834 = vld [vmem:[%s825 + $0x20] sm:$0xf]
      %v835 = vld [vmem:[%s825 + $0x24] sm:$0xf]
      %v836 = vld [vmem:[%s825 + $0x28] sm:$0xf]
      %v837 = vld [vmem:[%s825 + $0x2c] sm:$0xf]
      %v838 = vld [vmem:[%s825 + $0x30] sm:$0xf]
      %v839 = vld [vmem:[%s825 + $0x34] sm:$0xf]
      %v840 = vld [vmem:[%s825 + $0x38] sm:$0xf]
      %v841 = vld [vmem:[%s825 + $0x3c] sm:$0xf]
      %v858 = vunpack.c.l.b16 %v826
      %v859 = vunpack.c.l.b16 %v827
      %v860 = vunpack.c.l.b16 %v828
      %v861 = vunpack.c.l.b16 %v829
      %v862 = vunpack.c.l.b16 %v830
      %v863 = vunpack.c.l.b16 %v831
      %v864 = vunpack.c.l.b16 %v832
      %v865 = vunpack.c.l.b16 %v833
      %v866 = vunpack.c.l.b16 %v834
      %v867 = vunpack.c.l.b16 %v835
      %v868 = vunpack.c.l.b16 %v836
      %v869 = vunpack.c.l.b16 %v837
      %v870 = vunpack.c.l.b16 %v838
      %v871 = vunpack.c.l.b16 %v839
      %v872 = vunpack.c.l.b16 %v840
      %v873 = vunpack.c.l.b16 %v841
      %v874 = vpack.c.b16 %v859, %v858
      %v875 = vpack.c.b16 %v861, %v860
      %v876 = vpack.c.b16 %v863, %v862
      %v877 = vpack.c.b16 %v865, %v864
      %v878 = vpack.c.b16 %v867, %v866
      %v879 = vpack.c.b16 %v869, %v868
      %v880 = vpack.c.b16 %v871, %v870
      %v881 = vpack.c.b16 %v873, %v872
      %890 = vmatprep.subr.bf16.mxu0 0
      %891 = vmatpush1.bf16.msra.mxu0 %v881
      %892 = vmatprep.subr.bf16.mxu0 0
      %893 = vmatpush1.bf16.msra.mxu0 %v880
      %894 = vmatprep.subr.bf16.mxu0 0
      %895 = vmatpush1.bf16.msra.mxu0 %v879
      %896 = vmatprep.subr.bf16.mxu0 0
      %897 = vmatpush1.bf16.msra.mxu0 %v878
      %898 = vmatprep.subr.bf16.mxu0 0
      %899 = vmatpush1.bf16.msra.mxu0 %v877
      %900 = vmatprep.subr.bf16.mxu0 0
      %901 = vmatpush1.bf16.msra.mxu0 %v876
      %902 = vmatprep.subr.bf16.mxu0 0
      %903 = vmatpush1.bf16.msra.mxu0 %v875
      %904 = vmatprep.subr.bf16.mxu0 0
      %905 = vmatpush1.bf16.msra.mxu0 %v874
      %906 = vmatprep.subr.bf16.mxu0 0
      %907 = vmatpush2.bf16.msra.mxu0 0
      %908 = vmatprep.subr.bf16.mxu0 0
      %909 = vmatpush2.bf16.msra.mxu0 0
      %910 = vmatprep.subr.bf16.mxu0 0
      %911 = vmatpush2.bf16.msra.mxu0 0
      %912 = vmatprep.subr.bf16.mxu0 0
      %913 = vmatpush2.bf16.msra.mxu0 0
      %914 = vmatprep.subr.bf16.mxu0 0
      %915 = vmatpush2.bf16.msra.mxu0 0
      %916 = vmatprep.subr.bf16.mxu0 0
      %917 = vmatpush2.bf16.msra.mxu0 0
      %918 = vmatprep.subr.bf16.mxu0 0
      %919 = vmatpush2.bf16.msra.mxu0 0
      %920 = vmatprep.subr.bf16.mxu0 0
      %921 = vmatpush2.bf16.msra.mxu0 0
      %922 = vmatprep.mubr.bf16.mxu0 0
      %923 = vmatmul.mubr.bf16.gmra.mxu0 %v824
      %v924 = vpop.f32.mrf.mxu0
      %v925 = vadd.f32 0.0, %v924
      %v926 = vpop.f32.mrf.mxu0
      %v927 = vpop.f32.mrf.mxu0
      %v928 = vadd.f32 0.0, %v927
      %v929 = vpop.f32.mrf.mxu0
      %930 = vdwg.mxu0
      %v931 = vadd.f32 %v820, %v925
      %v932 = vadd.f32 %v821, %v928
      %v933 = vxor.u32 %v931, 2147483648
      %v934 = vxor.u32 %v932, 2147483648
      %v935 = vmul.f32 %v933, 1.442695
      %v936 = vpow.pop %v935
      %v937 = vmul.f32 %v934, 1.442695
      %v938 = vpow.pop %v937
      %v939 = vadd.f32 %v936, 1.0
      %v940 = vadd.f32 %v938, 1.0
      %v941 = vrcp.pop %v939
      %v942 = vmul.f32 1.0, %v941
      %v943 = vrcp.pop %v940
      %v944 = vmul.f32 1.0, %v943
      %945 = vst [vmem:[%s224] sm:$0xff] %v942
      %946 = vst [vmem:[%s224 + $0x8] sm:$0xff] %v944
      %p947 = scmp.lt.s32.totalorder %s16, 1
      %s948 = scalar_select %p947, %s16, 1
      %s949 = smul.addr %s948, 2
      %s950 = smul.addr %s949, 8
      %s951 = scalar_lea.vmem %s5, %s950
      // Predicated region
      $region41: #{repblock_forward.1} parent=39 // pred_check
        %p952 = pneg %p144
      $region42: #{repblock_forward.1} parent=39 // pred_check_branch
        %954 = sbr.rel (%p952) target = $region44
      $region43: #{repblock_forward.1} parent=39 // pred_region
        _
      $region44: #{repblock_forward.1} parent=39 // pred_fallthru
        _
    $region40: #{repblock_forward.1} parent=5 // pred_fallthru
      _
    %p955 = scmp.le.s32.totalorder 2, %s11
    // Predicated region
    $region45: #{repblock_forward.1} parent=5 // pred_check
      %p956 = pneg %p955
    $region46: #{repblock_forward.1} parent=5 // pred_check_branch
      %958 = sbr.rel (%p956) target = $region48
    $region47: #{repblock_forward.1} parent=5 // pred_region
      %s959 = ssub.s32 %s11, 2
      // Predicated region
      $region49: #{repblock_forward.1} parent=47 // pred_check
        %p960 = pneg %p150
      $region50: #{repblock_forward.1} parent=47 // pred_check_branch
        %962 = sbr.rel (%p960) target = $region52
      $region51: #{repblock_forward.1} parent=47 // pred_region
        %p963 = scmp.lt.s32.totalorder %s17, 1
        %s964 = scalar_select %p963, %s17, 1
        %s965 = smul.addr %s964, 2
        %s966 = smul.addr %s965, 8
        %s967 = scalar_lea.vmem %s5, %s966
      $region52: #{repblock_forward.1} parent=47 // pred_fallthru
        _
    $region48: #{repblock_forward.1} parent=5 // pred_fallthru
      _
  $region6: #{repblock_forward.1} parent=0 // loop_footer
    %s15 = sadd.s32 1, %s11
  $region7: #{repblock_forward.1} parent=0 // loop_footer_branch
    %10 = sbr.rel target = $region3
  $region8: #{repblock_forward.1} parent=0 // loop_exit
    _

</llo_original>
